<compile_context>
chip_gen: v7x
topology: tpu7x:2x2x1
jax: 0.10.0
libtpu: 0.0.40
codegen_flags: <defaults>
</compile_context>

<pallas_src>
import functools

import numpy as np
import jax
import jax.numpy as jnp
from jax.experimental import pallas as pl
from jax.experimental.pallas import tpu as pltpu


def _round8(n):
    return max(8, ((n + 7) // 8) * 8)


# ----------------------------------------------------------------------------
# pltpu.roll sign-convention probe, cached per backend (addresses the review
# concern about a stale global when backends are mixed).  Always evaluated
# OUTSIDE jit and passed into the fused kernel as a static flag.
# ----------------------------------------------------------------------------
_ROLL_CACHE = {}


def _roll_like_jnp():
    key = jax.default_backend()
    if key not in _ROLL_CACHE:
        def probe(x_ref, o_ref):
            o_ref[...] = pltpu.roll(x_ref[...], shift=1, axis=1)

        x = jnp.broadcast_to(jnp.arange(128, dtype=jnp.float32), (8, 128))
        y = pl.pallas_call(
            probe, out_shape=jax.ShapeDtypeStruct((8, 128), jnp.float32))(x)
        # jnp.roll convention: out[:, 0] == in[:, 127] == 127
        _ROLL_CACHE[key] = bool(float(y[0, 0]) == 127.0)
    return _ROLL_CACHE[key]


# ----------------------------------------------------------------------------
# Packed-slab layout (shared by the host-side packer and the kernel).
# ----------------------------------------------------------------------------
def _layout(cfg):
    K = cfg["kernel_size"]
    NL = cfg["num_layers"]
    Cn = cfg["n_channels"]
    Cr = cfg["n_channels_reduced"]
    Ce = cfg["n_encoding_channels"]
    Cp = _round8(max(1, Cr, Ce))        # padded per-layer activation channels
    Cnp = _round8(Cn)                   # padded hidden channels
    WC = max(K * Cp, Cnp, NL * Cp)      # weight-slab column width

    off = {}
    r = 0
    off["ew1"] = r; r += NL * Cnp
    off["ew2"] = r; r += NL * Cp
    off["dw1"] = r; r += NL * Cnp
    off["dw2"] = r; r += NL * Cp
    off["wc"] = r; r += Cp
    off["wd"] = r; r += 8
    RW = r

    rb = 0
    off["eb1"] = rb; rb += NL * Cnp
    off["eb2"] = rb; rb += NL * Cp
    off["db1"] = rb; rb += NL * Cnp
    off["db2"] = rb; rb += NL * Cp
    off["bc"] = rb; rb += Cp
    off["bd"] = rb; rb += 8
    RB = rb
    return Cp, Cnp, WC, RW, RB, off


def prepare_params(params, cfg):
    """Pack all weights/biases into two f32 slabs (host-side, done ONCE)."""
    K = cfg["kernel_size"]
    NL = cfg["num_layers"]
    Cn = cfg["n_channels"]
    Cr = cfg["n_channels_reduced"]
    Cp, Cnp, WC, RW, RB, off = _layout(cfg)

    W = np.zeros((RW, WC), np.float32)
    Bv = np.zeros((RB, 1), np.float32)

    def put_layers(layers, ow1, ow2, ob1, ob2):
        for i, pr in enumerate(layers):
            w1 = np.asarray(pr["w1"], np.float32)            # (Cn, Ci, K)
            Ci = w1.shape[1]
            blk = np.zeros((Cnp, K, Cp), np.float32)
            blk[:Cn, :, :Ci] = np.transpose(w1, (0, 2, 1))   # (Cn, K, Ci)
            W[ow1 + i * Cnp: ow1 + (i + 1) * Cnp, :K * Cp] = blk.reshape(Cnp, K * Cp)
            Bv[ob1 + i * Cnp: ob1 + i * Cnp + Cn, 0] = np.asarray(pr["b1"], np.float32)
            w2 = np.asarray(pr["w2"], np.float32)            # (Cr, Cn)
            W[ow2 + i * Cp: ow2 + i * Cp + Cr, :Cn] = w2
            Bv[ob2 + i * Cp: ob2 + i * Cp + Cr, 0] = np.asarray(pr["b2"], np.float32)

    put_layers(params["enc"], off["ew1"], off["ew2"], off["eb1"], off["eb2"])
    put_layers(params["dec"], off["dw1"], off["dw2"], off["db1"], off["db2"])

    def put_comp(w, b, orow_w, orow_b):
        w = np.asarray(w, np.float32)                        # (Co, Cr*NL)
        b = np.asarray(b, np.float32)
        Co = w.shape[0]
        for j in range(NL):
            W[orow_w: orow_w + Co, j * Cp: j * Cp + Cr] = w[:, j * Cr:(j + 1) * Cr]
        Bv[orow_b: orow_b + Co, 0] = b

    put_comp(params["enc_comp"]["w"], params["enc_comp"]["b"], off["wc"], off["bc"])
    put_comp(params["dec_comp"]["w"], params["dec_comp"]["b"], off["wd"], off["bd"])
    return jnp.asarray(W), jnp.asarray(Bv)


# ----------------------------------------------------------------------------
# Fused forward kernel (one grid step per Bt-row batch chunk).
# Activation layout inside the kernel: (channels, Bt*L) with time/batch fused
# onto the 128-lane axis.
# ----------------------------------------------------------------------------
def fused_tcn_ae_kernel(x_ref, w_ref, b_ref, o_ref, *,
                        L, K, NL, p, Bt, Cp, Cnp, off, roll_like_jnp):
    BL = Bt * L
    f32 = jnp.float32

    # layer-0 activation: real signal on channel 0, zeros elsewhere
    x_row = x_ref[0]                                               # (1, BL)
    row_ix = jax.lax.broadcasted_iota(jnp.int32, (Cp, BL), 0)
    h = jnp.where(row_ix == 0, jnp.broadcast_to(x_row, (Cp, BL)), 0.0)

    # one boundary mask per distinct shift offset (reused everywhere)
    lane = jax.lax.broadcasted_iota(jnp.int32, (1, BL), 1)
    lane_mod = (lane % L) if Bt > 1 else lane
    dils = [2 ** i for i in range(NL)]
    offsets = set()
    for dil in dils:
        pad = dil * (K - 1) // 2
        offsets.update(k * dil - pad for k in range(K))
    if p > 1 and L % p == 0:
        offsets.update(range(1, p))
        offsets.update(-r for r in range(1, p))
    masks = {}
    for ofs in sorted(offsets):
        if ofs == 0 or abs(ofs) >= L:
            continue
        masks[ofs] = (lane_mod < (L - ofs)) if ofs > 0 else (lane_mod >= (-ofs))

    def shift_lanes(v, ofs):
        # out[:, t] = v[:, t + ofs] within each length-L segment, zero outside.
        if ofs == 0:
            return v
        if abs(ofs) >= L:
            return jnp.zeros_like(v)
        s = (-ofs) % BL if roll_like_jnp else ofs % BL
        return jnp.where(masks[ofs], pltpu.roll(v, shift=s, axis=1), 0.0)

    # packed-weight accessors (static VMEM ref slices; row offsets are x8)
    def w1(base, i):
        return w_ref[base + i * Cnp: base + (i + 1) * Cnp, 0:K * Cp]

    def w2(base, i):
        return w_ref[base + i * Cp: base + (i + 1) * Cp, 0:Cnp]

    def b1(base, i):
        return b_ref[base + i * Cnp: base + (i + 1) * Cnp, :]

    def b2(base, i):
        return b_ref[base + i * Cp: base + (i + 1) * Cp, :]

    def conv_block(hin, wa, ba, wb, bb, dil):
        # dilated 'same' conv (odd K) + ReLU + 1x1 conv + ReLU.
        pad = dil * (K - 1) // 2
        cols = [shift_lanes(hin, k * dil - pad) for k in range(K)]
        slab = jnp.concatenate(cols, axis=0) if K > 1 else cols[0]   # (K*Cp, BL)
        hid = jnp.dot(wa, slab, preferred_element_type=f32) + ba
        hid = jnp.maximum(hid, 0.0)                                   # (Cnp, BL)
        out = jnp.dot(wb, hid, preferred_element_type=f32) + bb
        return jnp.maximum(out, 0.0)                                  # (Cp, BL)

    # -------- encoder --------
    feats = []
    for i in range(NL):
        h = conv_block(h, w1(off["ew1"], i), b1(off["eb1"], i),
                       w2(off["ew2"], i), b2(off["eb2"], i), 2 ** i)
        feats.append(h)
    enc = jnp.concatenate(feats, axis=0) if NL > 1 else feats[0]      # (NL*Cp, BL)

    # 1x1 compressor (no ReLU)
    hc = jnp.dot(w_ref[off["wc"]: off["wc"] + Cp, 0:NL * Cp], enc,
                 preferred_element_type=f32) + b_ref[off["bc"]: off["bc"] + Cp, :]

    # -------- AvgPool1d(p) + nearest upsample back to L (per segment) --------
    if p == 1:
        code_up = hc
    elif L % p == 0:
        # window sum via masked rolls, then broadcast each block-start value.
        s = hc
        for r in range(1, p):
            s = s + shift_lanes(hc, r)
        s = s * (1.0 / p)
        lane_p = lane_mod % p
        code_up = jnp.where(lane_p == 0, s, 0.0)
        for r in range(1, p):
            code_up = code_up + jnp.where(lane_p == r, shift_lanes(s, -r), 0.0)
    else:
        # general case: build the (L, L) pool+upsample matrix in-kernel (no DMA)
        Lc = L // p
        li = jax.lax.broadcasted_iota(jnp.int32, (L, L), 0)
        lj = jax.lax.broadcasted_iota(jnp.int32, (L, L), 1)
        M = jnp.where((li // p) == ((lj * Lc) // L), 1.0 / p, 0.0).astype(f32)
        segs = [jnp.dot(hc[:, b * L:(b + 1) * L], M, preferred_element_type=f32)
                for b in range(Bt)]
        code_up = jnp.concatenate(segs, axis=1) if Bt > 1 else segs[0]

    # -------- decoder --------
    h = code_up
    feats = []
    for i in range(NL):
        h = conv_block(h, w1(off["dw1"], i), b1(off["db1"], i),
                       w2(off["dw2"], i), b2(off["db2"], i), 2 ** (NL - 1 - i))
        feats.append(h)
    dec = jnp.concatenate(feats, axis=0) if NL > 1 else feats[0]      # (NL*Cp, BL)

    y = jnp.dot(w_ref[off["wd"]: off["wd"] + 8, 0:NL * Cp], dec,
                preferred_element_type=f32) + b_ref[off["bd"]: off["bd"] + 8, :]
    o_ref[0] = y[0:1, :].astype(o_ref.dtype)                          # lane-dense store


# ----------------------------------------------------------------------------
# Wrapper
# ----------------------------------------------------------------------------
def _choose_bt(B, L, max_lanes=1024):
    # Largest divisor Bt of B with Bt*L <= max_lanes, keeping >= 2 grid steps
    # whenever B >= 2 (so both v7x TensorCores get a step).
    best = 1
    for bt in range(1, B + 1):
        if B % bt:
            continue
        if bt > 1 and bt * L > max_lanes:
            continue
        if B >= 2 and B // bt < 2:
            continue
        best = bt
    return best


def tcn_ae_forward(x, wslab, bslab, *, cfg, roll_like_jnp):
    L = cfg["sequence_length"]
    K = cfg["kernel_size"]
    p = cfg["pool_rate"]
    NL = cfg["num_layers"]
    assert K % 2 == 1, "padding='same' emulation here assumes an odd kernel_size"

    Cp, Cnp, WC, RW, RB, off = _layout(cfg)
    assert wslab.shape == (RW, WC) and bslab.shape == (RB, 1)

    B = x.shape[0]
    Bt = _choose_bt(B, L)
    steps = B // Bt
    BL = Bt * L
    xs = x[:, :L].astype(jnp.float32).reshape(steps, 1, BL)   # x[:, :seq_len]

    kern = functools.partial(
        fused_tcn_ae_kernel, L=L, K=K, NL=NL, p=p, Bt=Bt, Cp=Cp, Cnp=Cnp,
        off=off, roll_like_jnp=roll_like_jnp)

    out = pl.pallas_call(
        kern,
        out_shape=jax.ShapeDtypeStruct((steps, 1, BL), jnp.float32),
        grid=(steps,),
        in_specs=[pl.BlockSpec((1, 1, BL), lambda s: (s, 0, 0)),
                  pl.BlockSpec(wslab.shape, lambda s: (0, 0)),
                  pl.BlockSpec(bslab.shape, lambda s: (0, 0))],
        out_specs=pl.BlockSpec((1, 1, BL), lambda s: (s, 0, 0)),
        compiler_params=pltpu.CompilerParams(
            dimension_semantics=("parallel",)),
    )(xs, wslab, bslab)
    return out.reshape(B, L)


# ----------------------------------------------------------------------------
# Pure-JAX reference (same math, no Pallas) for the correctness check
# ----------------------------------------------------------------------------
def conv_block_ref(x, w1, b1, w2, b2, dilation, K):
    # x: (B, L, Ci); w1: (Cn, Ci, K); b1: (Cn,); w2: (Cr, Cn); b2: (Cr,)
    B, L, _ = x.shape
    pad = dilation * (K - 1) // 2
    xp = jnp.pad(x, ((0, 0), (pad, pad), (0, 0)))
    acc = jnp.zeros((B, L, w1.shape[0]), jnp.float32)
    for k in range(K):
        acc = acc + jnp.einsum("blc,nc->bln",
                               xp[:, k * dilation:k * dilation + L, :],
                               w1[:, :, k])
    h = jnp.maximum(acc + b1[None, None, :], 0.0)
    out = jnp.einsum("bln,rn->blr", h, w2) + b2[None, None, :]
    return jnp.maximum(out, 0.0)


def tcn_ae_forward_ref(x, params, cfg):
    L, K, p, NL = (cfg["sequence_length"], cfg["kernel_size"],
                   cfg["pool_rate"], cfg["num_layers"])
    x = x[:, :L].astype(jnp.float32)
    h = x[:, :, None]
    feats = []
    for i in range(NL):
        pr = params["enc"][i]
        h = conv_block_ref(h, pr["w1"], pr["b1"], pr["w2"], pr["b2"], 2 ** i, K)
        feats.append(h)
    enc = jnp.concatenate(feats, axis=-1)
    hc = (jnp.einsum("blc,ec->ble", enc, params["enc_comp"]["w"])
          + params["enc_comp"]["b"][None, None, :])
    Lc = L // p
    B = x.shape[0]
    code = hc[:, :Lc * p, :].reshape(B, Lc, p, -1).mean(axis=2)
    idx = (jnp.arange(L) * Lc) // L
    h = code[:, idx, :]
    feats = []
    for i in range(NL):
        pr = params["dec"][i]
        h = conv_block_ref(h, pr["w1"], pr["b1"], pr["w2"], pr["b2"],
                           2 ** (NL - 1 - i), K)
        feats.append(h)
    dec = jnp.concatenate(feats, axis=-1)
    out = (jnp.einsum("blc,oc->blo", dec, params["dec_comp"]["w"])
           + params["dec_comp"]["b"][None, None, :])
    return out[:, :, 0]


# ----------------------------------------------------------------------------
# Deterministic synthetic parameters (PyTorch layout: conv w = (Cout, Cin, K))
# ----------------------------------------------------------------------------
def init_params(key, cfg):
    Cn = cfg["n_channels"]
    Cr = cfg["n_channels_reduced"]
    Ce = cfg["n_encoding_channels"]
    K = cfg["kernel_size"]
    NL = cfg["num_layers"]
    keys = iter(jax.random.split(key, 8 * NL + 8))

    def draw(shape, fan_in):
        return (jax.random.normal(next(keys), shape, jnp.float32)
                / np.sqrt(float(fan_in)))

    params = {"enc": [], "dec": []}
    for i in range(NL):
        Ci = 1 if i == 0 else Cr
        params["enc"].append({
            "w1": draw((Cn, Ci, K), Ci * K), "b1": draw((Cn,), Ci * K),
            "w2": draw((Cr, Cn), Cn), "b2": draw((Cr,), Cn)})
    params["enc_comp"] = {"w": draw((Ce, Cr * NL), Cr * NL),
                          "b": draw((Ce,), Cr * NL)}
    for i in range(NL):
        Ci = Ce if i == 0 else Cr
        params["dec"].append({
            "w1": draw((Cn, Ci, K), Ci * K), "b1": draw((Cn,), Ci * K),
            "w2": draw((Cr, Cn), Cn), "b2": draw((Cr,), Cn)})
    params["dec_comp"] = {"w": draw((1, Cr * NL), Cr * NL),
                          "b": draw((1,), Cr * NL)}
    return params


if __name__ == "__main__":
    cfg = dict(sequence_length=128, n_channels=8, n_channels_reduced=4,
               n_encoding_channels=8, kernel_size=5, pool_rate=2, num_layers=4)

    key = jax.random.PRNGKey(0)
    kx, kp = jax.random.split(key)
    B, L_in = 2, 160
    x = jax.random.normal(kx, (B, L_in), jnp.float32)
    params = init_params(kp, cfg)

    # One-time host-side prep (hoisted out of the per-call jitted path).
    wslab, bslab = prepare_params(params, cfg)
    roll_dir = _roll_like_jnp()          # probe runs once, outside jit

    fwd = jax.jit(functools.partial(tcn_ae_forward, cfg=cfg,
                                    roll_like_jnp=roll_dir))
    out = jax.block_until_ready(fwd(x, wslab, bslab))
    assert out.shape == (B, cfg["sequence_length"]), out.shape

    ref = jax.block_until_ready(tcn_ae_forward_ref(x, params, cfg))
    err = float(jnp.max(jnp.abs(out - ref)))
    scale = float(jnp.max(jnp.abs(ref))) + 1e-6
    assert err <= 1e-2 * scale + 1e-4, f"mismatch: max|diff|={err}, scale={scale}"

    print("KERNEL_OK")
</pallas_src>

<mosaic_0001>
module attributes {stable_mosaic.version = 11 : i64} {
  func.func @probe(%arg0: memref<8x128xf32, #tpu.memory_space<vmem>>, %arg1: memref<8x128xf32, #tpu.memory_space<vmem>>) attributes {dimension_semantics = [], scalar_prefetch = 0 : i64, scratch_operands = 0 : i64, tpu.core_type = #tpu.core_type<tc>} {
    %c0 = arith.constant 0 : index
    %c0_0 = arith.constant 0 : index
    %0 = vector.load %arg0[%c0, %c0_0] : memref<8x128xf32, #tpu.memory_space<vmem>>, vector<8x128xf32>
    %c1_i32 = arith.constant 1 : i32
    %1 = tpu.dynamic_rotate %0 by %c1_i32 dim 1 : vector<8x128xf32>, i32 -> vector<8x128xf32>
    %c0_1 = arith.constant 0 : index
    %c0_2 = arith.constant 0 : index
    %2 = vector.load %arg1[%c0_1, %c0_2] : memref<8x128xf32, #tpu.memory_space<vmem>>, vector<8x128xf32>
    tpu.vector_store %arg1[%c0_1, %c0_2], %1 {strides = array<i32>} : memref<8x128xf32, #tpu.memory_space<vmem>>, vector<8x128xf32>,
    return
  }
}

</mosaic_0001>

<llo_original>
// kernel: tpu_custom_call.1
$region0: #{tpu_custom_call.1}
  #allocation0 [shape = 'u32[]', space=smem, size = 0x4, offset = 0x4, fixed_abs, tag = 'smem constant byte address 0x4 - core index']
  #allocation1 [shape = 'u32[144,128]{1,0:T(1,128)}', space=vmem, size = 0x12000, scoped, tag = 'internal scratch']
  %s0 = inlined_call_operand.hbm [shape: f32[8,128], index: 0, kind: input, shape index: {}]
  %s1 = inlined_call_operand.hbm [shape: f32[8,128], index: 1, kind: output, shape index: {}]
  %s2 = sld [smem:[#allocation0]]
  $region18: #{tpu_custom_call.1} parent=0
    _
  %s4 = ssub.s32 1, %s2
  %s5 = scalar_select 0, %s4, %s2
  $region1: #{tpu_custom_call.1} parent=0
    #allocation2 [shape = 'u8[4096]{0}', space=vmem, size = 0x1000, scoped, tag = 'input window, operand 0, single buffered']
    #allocation3 [shape = 's32[1]{0}', space=sflag, size = 0x4, scoped, tag = 'scoped memory for tpu_custom_call.1']
    #allocation4 [shape = 's32[1]{0}', space=sflag, size = 0x4, scoped, tag = 'scoped memory for tpu_custom_call.1']
    #allocation5 [shape = 'u8[4096]{0}', space=vmem, size = 0x1000, scoped, tag = 'output window, operand 0, single buffered']
    %6 = vsyncpa [#allocation3], 0
    %7 = vsyncpa [#allocation4], 0
    // Predicated region
    $region2: #{tpu_custom_call.1} parent=1 // pred_check
      _
    $region3: #{tpu_custom_call.1} parent=1 // pred_check_branch
      %9 = sbr.rel (0) target = $region5
    $region4: #{tpu_custom_call.1} parent=1 // pred_region
      %s11 = ssub.s32 128, 128
      %12 = vsyncadd [#allocation3], %s11
      %s14 = sshll.u32 [#allocation2], 4
      %s15 = int_to_ptr.vmem [resolvable:$true] %s14
      %17 = dma.hbm_to_vmem [thread:$0]  %s0, 128, %s15, [#allocation3]
    $region5: #{tpu_custom_call.1} parent=1 // pred_fallthru
      _
    // Predicated region
    $region6: #{tpu_custom_call.1} parent=1 // pred_check
      _
    $region7: #{tpu_custom_call.1} parent=1 // pred_check_branch
      %19 = sbr.rel (0) target = $region9
    $region8: #{tpu_custom_call.1} parent=1 // pred_region
      %20 = dma.done [#allocation3], 128
    $region9: #{tpu_custom_call.1} parent=1 // pred_fallthru
      _
    %v21 = vld [vmem:[#allocation2] sm:$0xff]
    %22 = vrot.lane.b32.xlu0 %v21, 1
    %v23 = vpop.permute.xlu0 %22
    %24 = vst [vmem:[#allocation5] sm:$0xff] %v23
    // Predicated region
    $region10: #{tpu_custom_call.1} parent=1 // pred_check
      _
    $region11: #{tpu_custom_call.1} parent=1 // pred_check_branch
      %26 = sbr.rel (0) target = $region13
    $region12: #{tpu_custom_call.1} parent=1 // pred_region
      %s28 = ssub.s32 128, 128
      %29 = vsyncadd [#allocation4], %s28
      %s31 = sshll.u32 [#allocation5], 4
      %s32 = int_to_ptr.vmem [resolvable:$true] %s31
      %34 = dma.vmem_to_hbm [thread:$0]  %s32, 128, %s1, [#allocation4]
    $region13: #{tpu_custom_call.1} parent=1 // pred_fallthru
      _
    // Predicated region
    $region14: #{tpu_custom_call.1} parent=1 // pred_check
      _
    $region15: #{tpu_custom_call.1} parent=1 // pred_check_branch
      %36 = sbr.rel (0) target = $region17
    $region16: #{tpu_custom_call.1} parent=1 // pred_region
      %37 = dma.done [#allocation4], 128
    $region17: #{tpu_custom_call.1} parent=1 // pred_fallthru
      _
    %38 = vsyncpa [#allocation3], 1
    %39 = vsyncpa [#allocation4], 1

</llo_original>
